<compile_context>
chip_gen: v6e
topology: v6e:2x2x1
jax: 0.10.0
libtpu: 0.0.40
codegen_flags: <defaults>
</compile_context>

<pallas_src>
import functools
import math

import numpy as np
import jax
import jax.numpy as jnp
from jax import lax
from jax.experimental import pallas as pl
from jax.experimental.pallas import tpu as pltpu

LRELU_SLOPE = 0.1
_VMEM_LIMIT = 32 * 1024 * 1024


# -----------------------------------------------------------------------------
# Pallas kernel
# -----------------------------------------------------------------------------
def _conv_kernel(x_ref, w_ref, b_ref, o_ref, *,
                 stride, t_out, tc, kc, apply_act, slope):
    # x_ref: (T_in_arr, C_in_blk) f32   -- this batch item, this channel block,
    #                                       full (zero-padded) time axis
    # w_ref: (KC, TC*C_in_blk, C_ob) bf16 -- packed taps for this channel block
    # b_ref: (1, C_ob) f32
    # o_ref: (T_out, C_ob) f32
    # All indexing below is static -> strided VMEM loads + MXU matmuls.
    acc = None
    for c in range(kc):                        # static unroll over tap chunks
        parts = []
        for j in range(tc):
            k = c * tc + j                     # static tap offset
            if stride == 1:
                sl = x_ref[pl.ds(k, t_out), :]
            else:
                sl = x_ref[pl.ds(k, t_out, stride=stride), :]
            parts.append(sl.astype(jnp.bfloat16))
        lhs = parts[0] if tc == 1 else jnp.concatenate(parts, axis=-1)
        part = jnp.dot(lhs, w_ref[c], preferred_element_type=jnp.float32)
        acc = part if acc is None else acc + part
    y = acc + b_ref[...]                       # f32 epilogue
    if apply_act:
        y = jnp.where(y >= 0, y, slope * y)
    o_ref[...] = y.astype(o_ref.dtype)


def pallas_conv1d(x, layer):
    """x: (N, T, C_in) f32 channels-last -> (N, T_out, C_out) f32."""
    N, T, C_in = x.shape
    S, K, pad = layer['stride'], layer['K'], layer['pad']
    C_out = layer['C_out']
    C_in_blk, C_ob = layer['C_in_blk'], layer['C_ob']
    TC, KC, K_pad = layer['TC'], layer['KC'], layer['K_pad']
    GBOB, OB = layer['GBOB'], layer['OB']
    assert C_in == layer['C_in']

    T_out = (T + 2 * pad - K) // S + 1
    assert T_out >= 1
    # Zero-pad the time axis so every (tap, output-row) static read is in bounds.
    # Taps >= K carry zero weights, so the extra zero rows never change results.
    T_in_arr = max(T + pad, S * (T_out - 1) + K_pad)
    xp = jnp.pad(x, ((0, 0), (pad, T_in_arr - T - pad), (0, 0)))

    kernel = functools.partial(
        _conv_kernel, stride=S, t_out=T_out, tc=TC, kc=KC,
        apply_act=layer['act'], slope=LRELU_SLOPE)

    if OB == 1:
        in_idx = lambda g, n: (n, 0, g)
    else:
        in_idx = lambda g, n: (n, 0, g // OB)   # OB only splits output channels

    out = pl.pallas_call(
        kernel,
        out_shape=jax.ShapeDtypeStruct((N, T_out, C_out), jnp.float32),
        grid=(GBOB, N),            # channel-block outermost -> weights DMA'd once
        in_specs=[
            pl.BlockSpec((None, T_in_arr, C_in_blk), in_idx),
            pl.BlockSpec((None, KC, TC * C_in_blk, C_ob),
                         lambda g, n: (g, 0, 0, 0)),
            pl.BlockSpec((None, 1, C_ob), lambda g, n: (g, 0, 0)),
        ],
        out_specs=pl.BlockSpec((None, T_out, C_ob), lambda g, n: (n, 0, g)),
        compiler_params=pltpu.CompilerParams(
            dimension_semantics=("parallel", "parallel"),
            vmem_limit_bytes=_VMEM_LIMIT),
    )(xp, layer['w_blk'], layer['b_blk'])
    return out


# -----------------------------------------------------------------------------
# Parameter construction and packing
# -----------------------------------------------------------------------------
S_CFG = [  # (c_in, c_out, k, stride, groups, pad)
    (1, 16, 15, 1, 1, 7),
    (16, 64, 41, 4, 4, 20),
    (64, 256, 41, 4, 16, 20),
    (256, 1024, 41, 4, 64, 20),
    (1024, 1024, 41, 4, 256, 20),
    (1024, 1024, 5, 1, 1, 2),
]
S_POST = (1024, 1, 3, 1, 1, 1)
P_KERNEL = 5
P_CFG = [(1, 32), (32, 128), (128, 512), (512, 1024), (1024, 1024)]
P_STRIDES = [3, 3, 3, 3, 1]
PERIODS = [2, 3, 5, 7, 11]


def init_conv(key, c_in, c_out, k, groups=1):
    fan_in = (c_in // groups) * k
    bound = 1.0 / math.sqrt(fan_in)
    kw, kb = jax.random.split(key)
    w = jax.random.uniform(kw, (c_out, c_in // groups, k), jnp.float32, -bound, bound)
    b = jax.random.uniform(kb, (c_out,), jnp.float32, -bound, bound)
    return w, b


def _pick_group_block(groups, c_in_g, c_out_g, c_in, c_out):
    """Smallest group block whose channel widths satisfy the (8,128) lane rule."""
    if groups == 1:
        return 1
    for cand in range(1, groups + 1):
        if groups % cand:
            continue
        cib, cob = cand * c_in_g, cand * c_out_g
        ok_in = (cib % 128 == 0) or (cib == c_in)
        ok_out = (cob % 128 == 0) or (cob == c_out)
        if ok_in and ok_out and cob >= min(128, c_out):
            return cand
    return groups


def _pack_weight(w, groups, g_blk, tc):
    """(C_out, C_in/g, K) -> bf16 (GB, KC, TC*C_in_blk, C_out_blk), block-diag in-block."""
    C_out, C_in_g, K = w.shape
    C_out_g = C_out // groups
    GB = groups // g_blk
    C_in_blk = g_blk * C_in_g
    C_out_blk = g_blk * C_out_g
    KC = -(-K // tc)
    K_pad = KC * tc
    w_r = w.reshape(GB, g_blk, C_out_g, C_in_g, K)
    eye = jnp.eye(g_blk, dtype=w.dtype)
    wd = jnp.einsum('bgoik,gh->bkhigo', w_r, eye)      # zero off-group entries
    wd = wd.reshape(GB, K, C_in_blk, C_out_blk)
    wd = jnp.pad(wd, ((0, 0), (0, K_pad - K), (0, 0), (0, 0)))  # zero-weight taps
    wd = wd.reshape(GB, KC, tc, C_in_blk, C_out_blk)
    wd = wd.reshape(GB, KC, tc * C_in_blk, C_out_blk)
    return wd.astype(jnp.bfloat16)


def prep_layer(w, b, stride, pad, groups, act):
    C_out, C_in_g, K = w.shape
    C_in = C_in_g * groups
    C_out_g = C_out // groups
    g_blk = _pick_group_block(groups, C_in_g, C_out_g, C_in, C_out)
    C_in_blk = g_blk * C_in_g
    C_out_blk = g_blk * C_out_g
    GB = groups // g_blk
    TC = min(K, max(1, 256 // C_in_blk))     # target ~256-deep contraction
    KC = -(-K // TC)
    K_pad = KC * TC
    D = TC * C_in_blk

    # Output-channel sub-blocking for big dense layers (bounds weight-block VMEM).
    if groups == 1 and C_out_blk > 512 and C_out_blk % 512 == 0:
        OB, C_ob = C_out_blk // 512, 512
    else:
        OB, C_ob = 1, C_out_blk

    w_blk = _pack_weight(w, groups, g_blk, TC)          # (GB, KC, D, C_out_blk)
    if OB > 1:
        w_blk = w_blk.reshape(GB, KC, D, OB, C_ob)
        w_blk = jnp.transpose(w_blk, (0, 3, 1, 2, 4)).reshape(GB * OB, KC, D, C_ob)
    b_blk = b.reshape(GB * OB, 1, C_ob).astype(jnp.float32)

    return dict(
        w=w, b=b, stride=stride, pad=pad, groups=groups, act=act,
        K=K, C_in=C_in, C_out=C_out,
        C_in_blk=C_in_blk, C_ob=C_ob, TC=TC, KC=KC, K_pad=K_pad,
        GBOB=GB * OB, OB=OB,
        w_blk=w_blk, b_blk=b_blk,
    )


def build_params(key):
    # weight_norm at fresh init is the identity reparameterization -> plain weights.
    discs = []
    key, *ks = jax.random.split(key, 2 + len(S_CFG))
    convs = []
    for cfg, kk in zip(S_CFG, ks[:-1]):
        c_in, c_out, k, s, g, pad = cfg
        w, b = init_conv(kk, c_in, c_out, k, g)
        convs.append(prep_layer(w, b, s, pad, g, act=True))
    c_in, c_out, k, s, g, pad = S_POST
    w, b = init_conv(ks[-1], c_in, c_out, k, g)
    post = prep_layer(w, b, s, pad, g, act=False)
    discs.append(dict(type='S', convs=convs, post=post))
    for period in PERIODS:
        key, *ks = jax.random.split(key, 2 + len(P_CFG))
        convs = []
        for (c_in, c_out), s, kk in zip(P_CFG, P_STRIDES, ks[:-1]):
            w, b = init_conv(kk, c_in, c_out, P_KERNEL, 1)
            convs.append(prep_layer(w, b, s, 2, 1, act=True))
        w, b = init_conv(ks[-1], 1024, 1, 3, 1)
        post = prep_layer(w, b, 1, 1, 1, act=False)
        discs.append(dict(type='P', period=period, convs=convs, post=post))
    return discs


# -----------------------------------------------------------------------------
# Pallas-backed discriminators
# -----------------------------------------------------------------------------
def pallas_disc_s(p, x):
    h = jnp.transpose(x, (0, 2, 1))                    # (N, T, 1) channels-last
    fmap = []
    for layer in p['convs']:
        h = pallas_conv1d(h, layer)
        fmap.append(jnp.transpose(h, (0, 2, 1)))       # torch NCT layout for fmaps
    h = pallas_conv1d(h, p['post'])
    fmap.append(jnp.transpose(h, (0, 2, 1)))
    out = h.reshape(h.shape[0], -1)
    return out, fmap


def pallas_disc_p(p, x, period):
    b, c, t = x.shape
    if t % period != 0:
        n_pad = period - t % period
        x = jnp.pad(x, ((0, 0), (0, 0), (0, n_pad)), mode='reflect')
        t = t + n_pad
    H = t // period
    x4 = x.reshape(b, c, H, period)
    h = jnp.transpose(x4, (0, 3, 2, 1)).reshape(b * period, H, c)   # (B*W, H, C)
    fmap = []
    for layer in p['convs']:
        h = pallas_conv1d(h, layer)
        Ho, Co = h.shape[1], h.shape[2]
        fmap.append(h.reshape(b, period, Ho, Co).transpose(0, 3, 2, 1))  # NCHW
    h = pallas_conv1d(h, p['post'])
    Ho, Co = h.shape[1], h.shape[2]
    fm = h.reshape(b, period, Ho, Co).transpose(0, 3, 2, 1)
    fmap.append(fm)
    out = fm.reshape(b, -1)
    return out, fmap


def pallas_discriminator(params, y, y_hat):
    # Batch y and y_hat through every discriminator in one pass (shared weights).
    B = y.shape[0]
    x = jnp.concatenate([y, y_hat], axis=0)
    y_d_rs, y_d_gs, fmap_rs, fmap_gs = [], [], [], []
    for d in params:
        if d['type'] == 'S':
            out, fmaps = pallas_disc_s(d, x)
        else:
            out, fmaps = pallas_disc_p(d, x, d['period'])
        y_d_rs.append(out[:B])
        y_d_gs.append(out[B:])
        fmap_rs.append([f[:B] for f in fmaps])
        fmap_gs.append([f[B:] for f in fmaps])
    return y_d_rs, y_d_gs, fmap_rs, fmap_gs


# -----------------------------------------------------------------------------
# Pure-JAX reference (lax convs, bf16 operands + f32 accumulation so it mirrors
# the kernel's MXU numerics) for correctness checking.
# -----------------------------------------------------------------------------
def _leaky(x):
    return jnp.where(x >= 0, x, LRELU_SLOPE * x)


def ref_conv1d(x, layer):
    y = lax.conv_general_dilated(
        x.astype(jnp.bfloat16), layer['w'].astype(jnp.bfloat16),
        window_strides=(layer['stride'],),
        padding=[(layer['pad'], layer['pad'])],
        dimension_numbers=('NCH', 'OIH', 'NCH'),
        feature_group_count=layer['groups'],
        preferred_element_type=jnp.float32)
    return y + layer['b'][None, :, None]


def ref_conv2d_kx1(x, layer):
    y = lax.conv_general_dilated(
        x.astype(jnp.bfloat16), layer['w'][:, :, :, None].astype(jnp.bfloat16),
        window_strides=(layer['stride'], 1),
        padding=[(layer['pad'], layer['pad']), (0, 0)],
        dimension_numbers=('NCHW', 'OIHW', 'NCHW'),
        preferred_element_type=jnp.float32)
    return y + layer['b'][None, :, None, None]


def ref_disc_s(p, x):
    fmap = []
    h = x
    for layer in p['convs']:
        h = _leaky(ref_conv1d(h, layer))
        fmap.append(h)
    h = ref_conv1d(h, p['post'])
    fmap.append(h)
    return h.reshape(h.shape[0], -1), fmap


def ref_disc_p(p, x, period):
    b, c, t = x.shape
    if t % period != 0:
        n_pad = period - t % period
        x = jnp.pad(x, ((0, 0), (0, 0), (0, n_pad)), mode='reflect')
        t = t + n_pad
    h = x.reshape(b, c, t // period, period)
    fmap = []
    for layer in p['convs']:
        h = _leaky(ref_conv2d_kx1(h, layer))
        fmap.append(h)
    h = ref_conv2d_kx1(h, p['post'])
    fmap.append(h)
    return h.reshape(b, -1), fmap


def ref_discriminator(params, y, y_hat):
    y_d_rs, y_d_gs, fmap_rs, fmap_gs = [], [], [], []
    for d in params:
        if d['type'] == 'S':
            y_d_r, fmap_r = ref_disc_s(d, y)
            y_d_g, fmap_g = ref_disc_s(d, y_hat)
        else:
            y_d_r, fmap_r = ref_disc_p(d, y, d['period'])
            y_d_g, fmap_g = ref_disc_p(d, y_hat, d['period'])
        y_d_rs.append(y_d_r)
        y_d_gs.append(y_d_g)
        fmap_rs.append(fmap_r)
        fmap_gs.append(fmap_g)
    return y_d_rs, y_d_gs, fmap_rs, fmap_gs


def assert_close(a, b, name):
    a = np.asarray(jax.device_get(a), dtype=np.float32)
    b = np.asarray(jax.device_get(b), dtype=np.float32)
    err = float(np.max(np.abs(a - b))) if a.size else 0.0
    mag = float(np.max(np.abs(b))) + 1e-6
    if not (err <= 1e-2 * mag + 1e-3):
        raise AssertionError(f"{name}: max abs err {err} (ref magnitude {mag})")


if __name__ == "__main__":
    key = jax.random.PRNGKey(0)
    kp, ky, kg = jax.random.split(key, 3)

    params = build_params(kp)

    B, T = 2, 64
    y = jax.random.normal(ky, (B, 1, T), jnp.float32)
    y_hat = jax.random.normal(kg, (B, 1, T), jnp.float32)

    outs = pallas_discriminator(params, y, y_hat)
    jax.block_until_ready(outs)
    y_d_rs, y_d_gs, fmap_rs, fmap_gs = outs

    # Correctness check against the bf16-operand / f32-accumulation lax reference.
    r_rs, r_gs, r_frs, r_fgs = ref_discriminator(params, y, y_hat)
    for i in range(len(params)):
        assert_close(y_d_rs[i], r_rs[i], f"y_d_r[{i}]")
        assert_close(y_d_gs[i], r_gs[i], f"y_d_g[{i}]")
        for j in range(len(fmap_rs[i])):
            assert_close(fmap_rs[i][j], r_frs[i][j], f"fmap_r[{i}][{j}]")
            assert_close(fmap_gs[i][j], r_fgs[i][j], f"fmap_g[{i}][{j}]")

    print("KERNEL_OK")
</pallas_src>

<mosaic_0001>
module attributes {stable_mosaic.version = 11 : i64} {
  func.func @_conv_kernel(%arg0: i32, %arg1: i32, %arg2: memref<1x78x1xf32, #tpu.memory_space<vmem>>, %arg3: memref<1x1x15x16xbf16, #tpu.memory_space<vmem>>, %arg4: memref<1x1x16xf32, #tpu.memory_space<vmem>>, %arg5: memref<1x64x16xf32, #tpu.memory_space<vmem>>) attributes {dimension_semantics = [#tpu.dimension_semantics<parallel>, #tpu.dimension_semantics<parallel>], iteration_bounds = array<i64: 1, 4>, scalar_prefetch = 0 : i64, scratch_operands = 0 : i64, tpu.core_type = #tpu.core_type<tc>, window_params = [{transform_indices = @transform_0, window_bounds = array<i64: 1, 78, 1>}, {transform_indices = @transform_1, window_bounds = array<i64: 1, 1, 15, 16>}, {transform_indices = @transform_2, window_bounds = array<i64: 1, 1, 16>}, {transform_indices = @transform_3, window_bounds = array<i64: 1, 64, 16>}]} {
    %c0 = arith.constant 0 : index
    %c0_0 = arith.constant 0 : index
    %c0_1 = arith.constant 0 : index
    %0 = vector.load %arg2[%c0, %c0_0, %c0_1] : memref<1x78x1xf32, #tpu.memory_space<vmem>>, vector<1x64x1xf32>
    %1 = vector.shape_cast %0 : vector<1x64x1xf32> to vector<64x1xf32>
    %2 = arith.truncf %1 : vector<64x1xf32> to vector<64x1xbf16>
    %c0_2 = arith.constant 0 : index
    %c1 = arith.constant 1 : index
    %c0_3 = arith.constant 0 : index
    %3 = vector.load %arg2[%c0_2, %c1, %c0_3] : memref<1x78x1xf32, #tpu.memory_space<vmem>>, vector<1x64x1xf32>
    %4 = vector.shape_cast %3 : vector<1x64x1xf32> to vector<64x1xf32>
    %5 = arith.truncf %4 : vector<64x1xf32> to vector<64x1xbf16>
    %c0_4 = arith.constant 0 : index
    %c2 = arith.constant 2 : index
    %c0_5 = arith.constant 0 : index
    %6 = vector.load %arg2[%c0_4, %c2, %c0_5] : memref<1x78x1xf32, #tpu.memory_space<vmem>>, vector<1x64x1xf32>
    %7 = vector.shape_cast %6 : vector<1x64x1xf32> to vector<64x1xf32>
    %8 = arith.truncf %7 : vector<64x1xf32> to vector<64x1xbf16>
    %c0_6 = arith.constant 0 : index
    %c3 = arith.constant 3 : index
    %c0_7 = arith.constant 0 : index
    %9 = vector.load %arg2[%c0_6, %c3, %c0_7] : memref<1x78x1xf32, #tpu.memory_space<vmem>>, vector<1x64x1xf32>
    %10 = vector.shape_cast %9 : vector<1x64x1xf32> to vector<64x1xf32>
    %11 = arith.truncf %10 : vector<64x1xf32> to vector<64x1xbf16>
    %c0_8 = arith.constant 0 : index
    %c4 = arith.constant 4 : index
    %c0_9 = arith.constant 0 : index
    %12 = vector.load %arg2[%c0_8, %c4, %c0_9] : memref<1x78x1xf32, #tpu.memory_space<vmem>>, vector<1x64x1xf32>
    %13 = vector.shape_cast %12 : vector<1x64x1xf32> to vector<64x1xf32>
    %14 = arith.truncf %13 : vector<64x1xf32> to vector<64x1xbf16>
    %c0_10 = arith.constant 0 : index
    %c5 = arith.constant 5 : index
    %c0_11 = arith.constant 0 : index
    %15 = vector.load %arg2[%c0_10, %c5, %c0_11] : memref<1x78x1xf32, #tpu.memory_space<vmem>>, vector<1x64x1xf32>
    %16 = vector.shape_cast %15 : vector<1x64x1xf32> to vector<64x1xf32>
    %17 = arith.truncf %16 : vector<64x1xf32> to vector<64x1xbf16>
    %c0_12 = arith.constant 0 : index
    %c6 = arith.constant 6 : index
    %c0_13 = arith.constant 0 : index
    %18 = vector.load %arg2[%c0_12, %c6, %c0_13] : memref<1x78x1xf32, #tpu.memory_space<vmem>>, vector<1x64x1xf32>
    %19 = vector.shape_cast %18 : vector<1x64x1xf32> to vector<64x1xf32>
    %20 = arith.truncf %19 : vector<64x1xf32> to vector<64x1xbf16>
    %c0_14 = arith.constant 0 : index
    %c7 = arith.constant 7 : index
    %c0_15 = arith.constant 0 : index
    %21 = vector.load %arg2[%c0_14, %c7, %c0_15] : memref<1x78x1xf32, #tpu.memory_space<vmem>>, vector<1x64x1xf32>
    %22 = vector.shape_cast %21 : vector<1x64x1xf32> to vector<64x1xf32>
    %23 = arith.truncf %22 : vector<64x1xf32> to vector<64x1xbf16>
    %c0_16 = arith.constant 0 : index
    %c8 = arith.constant 8 : index
    %c0_17 = arith.constant 0 : index
    %24 = vector.load %arg2[%c0_16, %c8, %c0_17] : memref<1x78x1xf32, #tpu.memory_space<vmem>>, vector<1x64x1xf32>
    %25 = vector.shape_cast %24 : vector<1x64x1xf32> to vector<64x1xf32>
    %26 = arith.truncf %25 : vector<64x1xf32> to vector<64x1xbf16>
    %c0_18 = arith.constant 0 : index
    %c9 = arith.constant 9 : index
    %c0_19 = arith.constant 0 : index
    %27 = vector.load %arg2[%c0_18, %c9, %c0_19] : memref<1x78x1xf32, #tpu.memory_space<vmem>>, vector<1x64x1xf32>
    %28 = vector.shape_cast %27 : vector<1x64x1xf32> to vector<64x1xf32>
    %29 = arith.truncf %28 : vector<64x1xf32> to vector<64x1xbf16>
    %c0_20 = arith.constant 0 : index
    %c10 = arith.constant 10 : index
    %c0_21 = arith.constant 0 : index
    %30 = vector.load %arg2[%c0_20, %c10, %c0_21] : memref<1x78x1xf32, #tpu.memory_space<vmem>>, vector<1x64x1xf32>
    %31 = vector.shape_cast %30 : vector<1x64x1xf32> to vector<64x1xf32>
    %32 = arith.truncf %31 : vector<64x1xf32> to vector<64x1xbf16>
    %c0_22 = arith.constant 0 : index
    %c11 = arith.constant 11 : index
    %c0_23 = arith.constant 0 : index
    %33 = vector.load %arg2[%c0_22, %c11, %c0_23] : memref<1x78x1xf32, #tpu.memory_space<vmem>>, vector<1x64x1xf32>
    %34 = vector.shape_cast %33 : vector<1x64x1xf32> to vector<64x1xf32>
    %35 = arith.truncf %34 : vector<64x1xf32> to vector<64x1xbf16>
    %c0_24 = arith.constant 0 : index
    %c12 = arith.constant 12 : index
    %c0_25 = arith.constant 0 : index
    %36 = vector.load %arg2[%c0_24, %c12, %c0_25] : memref<1x78x1xf32, #tpu.memory_space<vmem>>, vector<1x64x1xf32>
    %37 = vector.shape_cast %36 : vector<1x64x1xf32> to vector<64x1xf32>
    %38 = arith.truncf %37 : vector<64x1xf32> to vector<64x1xbf16>
    %c0_26 = arith.constant 0 : index
    %c13 = arith.constant 13 : index
    %c0_27 = arith.constant 0 : index
    %39 = vector.load %arg2[%c0_26, %c13, %c0_27] : memref<1x78x1xf32, #tpu.memory_space<vmem>>, vector<1x64x1xf32>
    %40 = vector.shape_cast %39 : vector<1x64x1xf32> to vector<64x1xf32>
    %41 = arith.truncf %40 : vector<64x1xf32> to vector<64x1xbf16>
    %c0_28 = arith.constant 0 : index
    %c14 = arith.constant 14 : index
    %c0_29 = arith.constant 0 : index
    %42 = vector.load %arg2[%c0_28, %c14, %c0_29] : memref<1x78x1xf32, #tpu.memory_space<vmem>>, vector<1x64x1xf32>
    %43 = vector.shape_cast %42 : vector<1x64x1xf32> to vector<64x1xf32>
    %44 = arith.truncf %43 : vector<64x1xf32> to vector<64x1xbf16>
    %45 = tpu.concatenate %2, %5, %8, %11, %14, %17, %20, %23, %26, %29, %32, %35, %38, %41, %44 in 1 : vector<64x1xbf16>, vector<64x1xbf16>, vector<64x1xbf16>, vector<64x1xbf16>, vector<64x1xbf16>, vector<64x1xbf16>, vector<64x1xbf16>, vector<64x1xbf16>, vector<64x1xbf16>, vector<64x1xbf16>, vector<64x1xbf16>, vector<64x1xbf16>, vector<64x1xbf16>, vector<64x1xbf16>, vector<64x1xbf16> -> vector<64x15xbf16>
    %c0_30 = arith.constant 0 : index
    %c0_31 = arith.constant 0 : index
    %c0_32 = arith.constant 0 : index
    %c0_33 = arith.constant 0 : index
    %46 = vector.load %arg3[%c0_30, %c0_31, %c0_32, %c0_33] : memref<1x1x15x16xbf16, #tpu.memory_space<vmem>>, vector<1x1x15x16xbf16>
    %47 = vector.shape_cast %46 : vector<1x1x15x16xbf16> to vector<15x16xbf16>
    %cst = arith.constant dense<0.000000e+00> : vector<64x16xf32>
    %48 = tpu.matmul %45, %47, %cst {dimension_numbers = #tpu.dot_dimension_numbers<[1], [0], [0], [1], [0, 0, 1, 1], [], []>} : vector<64x15xbf16>, vector<15x16xbf16>, vector<64x16xf32> -> vector<64x16xf32>
    %c0_34 = arith.constant 0 : index
    %c0_35 = arith.constant 0 : index
    %c0_36 = arith.constant 0 : index
    %49 = vector.load %arg4[%c0_34, %c0_35, %c0_36] : memref<1x1x16xf32, #tpu.memory_space<vmem>>, vector<1x1x16xf32>
    %50 = vector.shape_cast %49 : vector<1x1x16xf32> to vector<1x16xf32>
    %51 = vector.broadcast %50 : vector<1x16xf32> to vector<64x16xf32>
    %52 = arith.addf %48, %51 : vector<64x16xf32>
    %cst_37 = arith.constant 0.000000e+00 : f32
    %53 = vector.broadcast %cst_37 : f32 to vector<64x16xf32>
    %54 = arith.cmpf oge, %52, %53 : vector<64x16xf32>
    %cst_38 = arith.constant 1.000000e-01 : f32
    %55 = vector.broadcast %cst_38 : f32 to vector<64x16xf32>
    %56 = arith.mulf %55, %52 : vector<64x16xf32>
    %57 = arith.select %54, %52, %56 : vector<64x16xi1>, vector<64x16xf32>
    %c0_39 = arith.constant 0 : index
    %c0_40 = arith.constant 0 : index
    %c0_41 = arith.constant 0 : index
    %58 = vector.load %arg5[%c0_39, %c0_40, %c0_41] : memref<1x64x16xf32, #tpu.memory_space<vmem>>, vector<1x64x16xf32>
    %59 = vector.shape_cast %58 : vector<1x64x16xf32> to vector<64x16xf32>
    %60 = vector.shape_cast %57 : vector<64x16xf32> to vector<1x64x16xf32>
    tpu.vector_store %arg5[%c0_39, %c0_40, %c0_41], %60 {strides = array<i32>} : memref<1x64x16xf32, #tpu.memory_space<vmem>>, vector<1x64x16xf32>,
    return
  }
  func.func @transform_0(%arg0: i32, %arg1: i32) -> (i32, i32, i32) {
    %c0_i32 = arith.constant 0 : i32
    %c0_i32_0 = arith.constant 0 : i32
    return %arg1, %c0_i32, %arg0 : i32, i32, i32
  }
  func.func @transform_1(%arg0: i32, %arg1: i32) -> (i32, i32, i32, i32) {
    %c0_i32 = arith.constant 0 : i32
    %c0_i32_0 = arith.constant 0 : i32
    %c0_i32_1 = arith.constant 0 : i32
    %c0_i32_2 = arith.constant 0 : i32
    return %arg0, %c0_i32, %c0_i32_0, %c0_i32_1 : i32, i32, i32, i32
  }
  func.func @transform_2(%arg0: i32, %arg1: i32) -> (i32, i32, i32) {
    %c0_i32 = arith.constant 0 : i32
    %c0_i32_0 = arith.constant 0 : i32
    %c0_i32_1 = arith.constant 0 : i32
    return %arg0, %c0_i32, %c0_i32_0 : i32, i32, i32
  }
  func.func @transform_3(%arg0: i32, %arg1: i32) -> (i32, i32, i32) {
    %c0_i32 = arith.constant 0 : i32
    %c0_i32_0 = arith.constant 0 : i32
    return %arg1, %c0_i32, %arg0 : i32, i32, i32
  }
}

</mosaic_0001>

<llo_original>
// kernel: tpu_custom_call.1
$region0: #{tpu_custom_call.1}
  #allocation0 [shape = 'u32[]', space=smem, size = 0x4, offset = 0x4, fixed_abs, tag = 'smem constant byte address 0x4 - core index']
  #allocation1 [shape = 'u32[144,128]{1,0:T(1,128)}', space=vmem, size = 0x12000, scoped, tag = 'internal scratch']
  %s0 = inlined_call_operand.vmem [shape: f32[4,78,1], index: 0, kind: input, shape index: {}]
  %s1 = inlined_call_operand.vmem [shape: bf16[1,1,15,16], index: 1, kind: input, shape index: {}]
  %s2 = inlined_call_operand.vmem [shape: f32[1,1,16], index: 2, kind: input, shape index: {}]
  %s3 = inlined_call_operand.vmem [shape: f32[4,64,16], index: 3, kind: output, shape index: {}]
  %s4 = sld [smem:[#allocation0]]
  $region45: #{tpu_custom_call.1} parent=0
    _
  %s6 = ssub.s32 1, %s4
  %s7 = scalar_select 0, %s6, %s4
  loop: start=0, step=1, limit=6
  $region2: #{tpu_custom_call.1} parent=0 // loop_pre_header
    _
  $region3: #{tpu_custom_call.1} parent=0 // loop_header
    %s9 = sphi 0, %s13
    %p10 = scmp.ge.s32.totalorder %s9, 6
    %s16 = sphi 0, %s28
    %s17 = sphi 0, %s24
    %s18 = sphi 0, %s16
    %s19 = sphi 0, %s17
    %s20 = sphi 0, %s18
    %s21 = sphi 0, %s19
    %s33 = sphi 0, %s35
    %s36 = sphi 0, %s33
    %s37 = sphi 0, %s36
    %s53 = sphi 0, %s37
    %s59 = sphi 0, %s61
    %s62 = sphi 0, %s59
    %s63 = sphi 0, %s62
    %s79 = sphi 0, %s63
    %s85 = sphi 0, %s87
    %s88 = sphi 0, %s85
    %s89 = sphi 0, %s88
    %s105 = sphi 0, %s89
    %s113 = sphi 0, %s115
    %s116 = sphi 0, %s113
    %s117 = sphi 0, %s116
    %s133 = sphi 0, %s117
  $region4: #{tpu_custom_call.1} parent=0 // loop_header_branch
    %12 = sbr.rel (%p10) target = $region8
  $region5: #{tpu_custom_call.1} parent=0 // loop_body
    %s14 = ssub.s32 %s9, 1
    %s15 = ssub.s32 %s9, 2
    %s22 = sadd.s32 1, %s17
    %p23 = scmp.ge.s32.totalorder %s22, 4
    %s24 = scalar_select %p23, 0, %s22
    %s25 = sadd.s32 1, %s16
    %s26 = scalar_select %p23, %s25, %s16
    %p27 = scmp.ge.s32.totalorder %s26, 1
    %s28 = scalar_select %p27, 0, %s26
    %s29 = ssub.s32 %s17, %s24
    %s30 = ssub.s32 %s16, %s28
    %s31 = sor.u32 %s29, %s30
    %p32 = scmp.eq.s32.totalorder %s31, 0
    %s34 = sadd.s32 %s33, 1
    %s35 = scalar_select %p32, %s33, %s34
    %p38 = pneg %p32
    %p39 = scmp.eq.s32.totalorder %s9, 3
    %p40 = por %p38, %p39
    %p41 = scmp.ne.s32.totalorder %s33, %s36
    %p42 = scmp.eq.s32.totalorder %s9, 0
    %p43 = por %p41, %p42
    %p44 = scmp.ne.s32.totalorder %s33, %s36
    %p45 = scmp.eq.s32.totalorder %s14, 3
    %p46 = por %p44, %p45
    %p47 = scmp.ne.s32.totalorder %s36, %s37
    %p48 = scmp.eq.s32.totalorder %s14, 0
    %p49 = por %p47, %p48
    %p50 = scmp.ne.s32.totalorder %s36, %s37
    %p51 = scmp.eq.s32.totalorder %s15, 3
    %p52 = por %p50, %p51
    %p54 = scmp.ne.s32.totalorder %s37, %s53
    %p55 = scmp.eq.s32.totalorder %s15, 0
    %p56 = por %p54, %p55
    %s57 = ssub.s32 %s16, %s28
    %p58 = scmp.eq.s32.totalorder %s57, 0
    %s60 = sadd.s32 %s59, 1
    %s61 = scalar_select %p58, %s59, %s60
    %p64 = pneg %p58
    %p65 = scmp.eq.s32.totalorder %s9, 3
    %p66 = por %p64, %p65
    %p67 = scmp.ne.s32.totalorder %s59, %s62
    %p68 = scmp.eq.s32.totalorder %s9, 0
    %p69 = por %p67, %p68
    %p70 = scmp.ne.s32.totalorder %s59, %s62
    %p71 = scmp.eq.s32.totalorder %s14, 3
    %p72 = por %p70, %p71
    %p73 = scmp.ne.s32.totalorder %s62, %s63
    %p74 = scmp.eq.s32.totalorder %s14, 0
    %p75 = por %p73, %p74
    %p76 = scmp.ne.s32.totalorder %s62, %s63
    %p77 = scmp.eq.s32.totalorder %s15, 3
    %p78 = por %p76, %p77
    %p80 = scmp.ne.s32.totalorder %s63, %s79
    %p81 = scmp.eq.s32.totalorder %s15, 0
    %p82 = por %p80, %p81
    %s83 = ssub.s32 %s16, %s28
    %p84 = scmp.eq.s32.totalorder %s83, 0
    %s86 = sadd.s32 %s85, 1
    %s87 = scalar_select %p84, %s85, %s86
    %p90 = pneg %p84
    %p91 = scmp.eq.s32.totalorder %s9, 3
    %p92 = por %p90, %p91
    %p93 = scmp.ne.s32.totalorder %s85, %s88
    %p94 = scmp.eq.s32.totalorder %s9, 0
    %p95 = por %p93, %p94
    %p96 = scmp.ne.s32.totalorder %s85, %s88
    %p97 = scmp.eq.s32.totalorder %s14, 3
    %p98 = por %p96, %p97
    %p99 = scmp.ne.s32.totalorder %s88, %s89
    %p100 = scmp.eq.s32.totalorder %s14, 0
    %p101 = por %p99, %p100
    %p102 = scmp.ne.s32.totalorder %s88, %s89
    %p103 = scmp.eq.s32.totalorder %s15, 3
    %p104 = por %p102, %p103
    %p106 = scmp.ne.s32.totalorder %s89, %s105
    %p107 = scmp.eq.s32.totalorder %s15, 0
    %p108 = por %p106, %p107
    %s109 = ssub.s32 %s17, %s24
    %s110 = ssub.s32 %s16, %s28
    %s111 = sor.u32 %s109, %s110
    %p112 = scmp.eq.s32.totalorder %s111, 0
    %s114 = sadd.s32 %s113, 1
    %s115 = scalar_select %p112, %s113, %s114
    %p118 = pneg %p112
    %p119 = scmp.eq.s32.totalorder %s9, 3
    %p120 = por %p118, %p119
    %p121 = scmp.ne.s32.totalorder %s113, %s116
    %p122 = scmp.eq.s32.totalorder %s9, 0
    %p123 = por %p121, %p122
    %p124 = scmp.ne.s32.totalorder %s113, %s116
    %p125 = scmp.eq.s32.totalorder %s14, 3
    %p126 = por %p124, %p125
    %p127 = scmp.ne.s32.totalorder %s116, %s117
    %p128 = scmp.eq.s32.totalorder %s14, 0
    %p129 = por %p127, %p128
    %p130 = scmp.ne.s32.totalorder %s116, %s117
    %p131 = scmp.eq.s32.totalorder %s15, 3
    %p132 = por %p130, %p131
    %p134 = scmp.ne.s32.totalorder %s117, %s133
    %p135 = scmp.eq.s32.totalorder %s15, 0
    %p136 = por %p134, %p135
    %p137 = scmp.le.s32.totalorder 1, %s9
    %p138 = scmp.lt.s32.totalorder %s9, 5
    %p139 = pnand %p137, %p138
    %p140 = pneg %p139
    // Predicated region
    $region9: #{tpu_custom_call.1} parent=5 // pred_check
      _
    $region10: #{tpu_custom_call.1} parent=5 // pred_check_branch
      %142 = sbr.rel (%p139) target = $region12
    $region11: #{tpu_custom_call.1} parent=5 // pred_region
      %s143 = ssub.s32 %s9, 1
      // Predicated region
      $region13: #{tpu_custom_call.1} parent=11 // pred_check
        %p144 = pneg %p75
      $region14: #{tpu_custom_call.1} parent=11 // pred_check_branch
        %146 = sbr.rel (%p144) target = $region16
      $region15: #{tpu_custom_call.1} parent=11 // pred_region
        %p147 = scmp.lt.s32.totalorder %s18, 0
        %s148 = scalar_select %p147, %s18, 0
        %s149 = smul.addr %s148, 2
        %s150 = smul.addr %s149, 4
        %s151 = scalar_lea.vmem %s1, %s150
      $region16: #{tpu_custom_call.1} parent=11 // pred_fallthru
        _
      // Predicated region
      $region17: #{tpu_custom_call.1} parent=11 // pred_check
        %p152 = pneg %p101
      $region18: #{tpu_custom_call.1} parent=11 // pred_check_branch
        %154 = sbr.rel (%p152) target = $region20
      $region19: #{tpu_custom_call.1} parent=11 // pred_region
        %p155 = scmp.lt.s32.totalorder %s18, 0
        %s156 = scalar_select %p155, %s18, 0
        %s157 = scalar_lea.vmem %s2, %s156
      $region20: #{tpu_custom_call.1} parent=11 // pred_fallthru
        _
    $region12: #{tpu_custom_call.1} parent=5 // pred_fallthru
      _
    %p158 = scmp.lt.s32.totalorder %s9, 4
    // Predicated region
    $region21: #{tpu_custom_call.1} parent=5 // pred_check
      %p159 = pneg %p158
    $region22: #{tpu_custom_call.1} parent=5 // pred_check_branch
      %161 = sbr.rel (%p159) target = $region24
    $region23: #{tpu_custom_call.1} parent=5 // pred_region
      // Predicated region
      $region25: #{tpu_custom_call.1} parent=23 // pred_check
        %p162 = pneg %p43
      $region26: #{tpu_custom_call.1} parent=23 // pred_check_branch
        %164 = sbr.rel (%p162) target = $region28
      $region27: #{tpu_custom_call.1} parent=23 // pred_region
        %p165 = scmp.lt.s32.totalorder %s17, 3
        %s166 = scalar_select %p165, %s17, 3
        %p167 = scmp.lt.s32.totalorder %s16, 0
        %s168 = scalar_select %p167, %s16, 0
        %s169 = smul.addr %s166, 10
        %s170 = sadd.s32 %s168, %s169
        %s171 = smul.addr %s170, 8
        %s172 = scalar_lea.vmem %s0, %s171
      $region28: #{tpu_custom_call.1} parent=23 // pred_fallthru
        _
    $region24: #{tpu_custom_call.1} parent=5 // pred_fallthru
      _
    %p173 = scmp.le.s32.totalorder 1, %s9
    %p174 = scmp.lt.s32.totalorder %s9, 5
    %p175 = pnand %p173, %p174
    %p176 = pneg %p175
    // Predicated region
    $region29: #{tpu_custom_call.1} parent=5 // pred_check
      _
    $region30: #{tpu_custom_call.1} parent=5 // pred_check_branch
      %178 = sbr.rel (%p175) target = $region32
    $region31: #{tpu_custom_call.1} parent=5 // pred_region
      %s179 = ssub.s32 %s9, 1
      %p180 = scmp.lt.s32.totalorder %s19, 3
      %s181 = scalar_select %p180, %s19, 3
      %p182 = scmp.lt.s32.totalorder %s18, 0
      %s183 = scalar_select %p182, %s18, 0
      %s184 = smul.addr %s181, 10
      %s185 = sadd.s32 %s183, %s184
      %s186 = smul.addr %s185, 8
      %s187 = scalar_lea.vmem %s0, %s186
      %p188 = pneg %p49
      %p189 = pneg %p46
      %p190 = scmp.lt.s32.totalorder %s18, 0
      %s191 = scalar_select %p190, %s18, 0
      %s192 = smul.addr %s191, 2
      %s193 = smul.addr %s192, 4
      %s194 = scalar_lea.vmem %s1, %s193
      %p195 = pneg %p75
      %p196 = pneg %p72
      %p197 = scmp.lt.s32.totalorder %s18, 0
      %s198 = scalar_select %p197, %s18, 0
      %s199 = scalar_lea.vmem %s2, %s198
      %p200 = pneg %p101
      %p201 = pneg %p98
      %p202 = pneg %p129
      %p203 = pneg %p126
      %p204 = scmp.lt.s32.totalorder %s19, 3
      %s205 = scalar_select %p204, %s19, 3
      %p206 = scmp.lt.s32.totalorder %s18, 0
      %s207 = scalar_select %p206, %s18, 0
      %s208 = smul.addr %s205, 8
      %s209 = sadd.s32 %s207, %s208
      %s210 = smul.addr %s209, 8
      %s211 = scalar_lea.vmem %s3, %s210
      %p212 = scmp.lt.s32.totalorder %s19, 3
      %s213 = scalar_select %p212, %s19, 3
      %p214 = scmp.lt.s32.totalorder %s18, 0
      %s215 = scalar_select %p214, %s18, 0
      %s216 = smul.addr %s213, 10
      %s217 = sadd.s32 %s215, %s216
      %s218 = smul.addr %s217, 8
      %s219 = scalar_lea.vmem %s0, %s218
      %p220 = scmp.lt.s32.totalorder %s18, 0
      %s221 = scalar_select %p220, %s18, 0
      %s222 = smul.addr %s221, 2
      %s223 = smul.addr %s222, 4
      %s224 = scalar_lea.vmem %s1, %s223
      %p225 = scmp.lt.s32.totalorder %s18, 0
      %s226 = scalar_select %p225, %s18, 0
      %s227 = scalar_lea.vmem %s2, %s226
      %p228 = scmp.lt.s32.totalorder %s19, 3
      %s229 = scalar_select %p228, %s19, 3
      %p230 = scmp.lt.s32.totalorder %s18, 0
      %s231 = scalar_select %p230, %s18, 0
      %s232 = smul.addr %s229, 8
      %s233 = sadd.s32 %s231, %s232
      %s234 = smul.addr %s233, 8
      %s235 = scalar_lea.vmem %s3, %s234
      %v237 = vld [vmem:[%s219] sm:$0xff]
      %v238 = vld [vmem:[%s219 + $0x8] sm:$0xff]
      %v239 = vld [vmem:[%s219 + $0x10] sm:$0xff]
      %v240 = vld [vmem:[%s219 + $0x18] sm:$0xff]
      %v241 = vld [vmem:[%s219 + $0x20] sm:$0xff]
      %v242 = vld [vmem:[%s219 + $0x28] sm:$0xff]
      %v243 = vld [vmem:[%s219 + $0x30] sm:$0xff]
      %v244 = vld [vmem:[%s219 + $0x38] sm:$0xff]
      %v245 = vpack.c.bf16 %v238, %v237
      %v246 = vpack.c.bf16 %v240, %v239
      %v247 = vpack.c.bf16 %v242, %v241
      %v248 = vpack.c.bf16 %v244, %v243
      %v249 = vld [vmem:[%s219 + $0x1] sm:$0xff]
      %v250 = vld [vmem:[%s219 + $0x9] sm:$0xff]
      %v251 = vld [vmem:[%s219 + $0x11] sm:$0xff]
      %v252 = vld [vmem:[%s219 + $0x19] sm:$0xff]
      %v253 = vld [vmem:[%s219 + $0x21] sm:$0xff]
      %v254 = vld [vmem:[%s219 + $0x29] sm:$0xff]
      %v255 = vld [vmem:[%s219 + $0x31] sm:$0xff]
      %v256 = vld [vmem:[%s219 + $0x39] sm:$0xff]
      %v257 = vpack.c.bf16 %v250, %v249
      %v258 = vpack.c.bf16 %v252, %v251
      %v259 = vpack.c.bf16 %v254, %v253
      %v260 = vpack.c.bf16 %v256, %v255
      %v261 = vld [vmem:[%s219 + $0x2] sm:$0xff]
      %v262 = vld [vmem:[%s219 + $0xa] sm:$0xff]
      %v263 = vld [vmem:[%s219 + $0x12] sm:$0xff]
      %v264 = vld [vmem:[%s219 + $0x1a] sm:$0xff]
      %v265 = vld [vmem:[%s219 + $0x22] sm:$0xff]
      %v266 = vld [vmem:[%s219 + $0x2a] sm:$0xff]
      %v267 = vld [vmem:[%s219 + $0x32] sm:$0xff]
      %v268 = vld [vmem:[%s219 + $0x3a] sm:$0xff]
      %v269 = vpack.c.bf16 %v262, %v261
      %v270 = vpack.c.bf16 %v264, %v263
      %v271 = vpack.c.bf16 %v266, %v265
      %v272 = vpack.c.bf16 %v268, %v267
      %v273 = vld [vmem:[%s219 + $0x3] sm:$0xff]
      %v274 = vld [vmem:[%s219 + $0xb] sm:$0xff]
      %v275 = vld [vmem:[%s219 + $0x13] sm:$0xff]
      %v276 = vld [vmem:[%s219 + $0x1b] sm:$0xff]
      %v277 = vld [vmem:[%s219 + $0x23] sm:$0xff]
      %v278 = vld [vmem:[%s219 + $0x2b] sm:$0xff]
      %v279 = vld [vmem:[%s219 + $0x33] sm:$0xff]
      %v280 = vld [vmem:[%s219 + $0x3b] sm:$0xff]
      %v281 = vpack.c.bf16 %v274, %v273
      %v282 = vpack.c.bf16 %v276, %v275
      %v283 = vpack.c.bf16 %v278, %v277
      %v284 = vpack.c.bf16 %v280, %v279
      %v285 = vld [vmem:[%s219 + $0x4] sm:$0xff]
      %v286 = vld [vmem:[%s219 + $0xc] sm:$0xff]
      %v287 = vld [vmem:[%s219 + $0x14] sm:$0xff]
      %v288 = vld [vmem:[%s219 + $0x1c] sm:$0xff]
      %v289 = vld [vmem:[%s219 + $0x24] sm:$0xff]
      %v290 = vld [vmem:[%s219 + $0x2c] sm:$0xff]
      %v291 = vld [vmem:[%s219 + $0x34] sm:$0xff]
      %v292 = vld [vmem:[%s219 + $0x3c] sm:$0xff]
      %v293 = vpack.c.bf16 %v286, %v285
      %v294 = vpack.c.bf16 %v288, %v287
      %v295 = vpack.c.bf16 %v290, %v289
      %v296 = vpack.c.bf16 %v292, %v291
      %v297 = vld [vmem:[%s219 + $0x5] sm:$0xff]
      %v298 = vld [vmem:[%s219 + $0xd] sm:$0xff]
      %v299 = vld [vmem:[%s219 + $0x15] sm:$0xff]
      %v300 = vld [vmem:[%s219 + $0x1d] sm:$0xff]
      %v301 = vld [vmem:[%s219 + $0x25] sm:$0xff]
      %v302 = vld [vmem:[%s219 + $0x2d] sm:$0xff]
      %v303 = vld [vmem:[%s219 + $0x35] sm:$0xff]
      %v304 = vld [vmem:[%s219 + $0x3d] sm:$0xff]
      %v305 = vpack.c.bf16 %v298, %v297
      %v306 = vpack.c.bf16 %v300, %v299
      %v307 = vpack.c.bf16 %v302, %v301
      %v308 = vpack.c.bf16 %v304, %v303
      %v309 = vld [vmem:[%s219 + $0x6] sm:$0xff]
      %v310 = vld [vmem:[%s219 + $0xe] sm:$0xff]
      %v311 = vld [vmem:[%s219 + $0x16] sm:$0xff]
      %v312 = vld [vmem:[%s219 + $0x1e] sm:$0xff]
      %v313 = vld [vmem:[%s219 + $0x26] sm:$0xff]
      %v314 = vld [vmem:[%s219 + $0x2e] sm:$0xff]
      %v315 = vld [vmem:[%s219 + $0x36] sm:$0xff]
      %v316 = vld [vmem:[%s219 + $0x3e] sm:$0xff]
      %v317 = vpack.c.bf16 %v310, %v309
      %v318 = vpack.c.bf16 %v312, %v311
      %v319 = vpack.c.bf16 %v314, %v313
      %v320 = vpack.c.bf16 %v316, %v315
      %v321 = vld [vmem:[%s219 + $0x7] sm:$0xff]
      %v322 = vld [vmem:[%s219 + $0xf] sm:$0xff]
      %v323 = vld [vmem:[%s219 + $0x17] sm:$0xff]
      %v324 = vld [vmem:[%s219 + $0x1f] sm:$0xff]
      %v325 = vld [vmem:[%s219 + $0x27] sm:$0xff]
      %v326 = vld [vmem:[%s219 + $0x2f] sm:$0xff]
      %v327 = vld [vmem:[%s219 + $0x37] sm:$0xff]
      %v328 = vld [vmem:[%s219 + $0x3f] sm:$0xff]
      %v329 = vpack.c.bf16 %v322, %v321
      %v330 = vpack.c.bf16 %v324, %v323
      %v331 = vpack.c.bf16 %v326, %v325
      %v332 = vpack.c.bf16 %v328, %v327
      %v333 = vld [vmem:[%s219 + $0x40] sm:$0xff]
      %v334 = vpack.c.bf16 %v239, %v238
      %v335 = vpack.c.bf16 %v241, %v240
      %v336 = vpack.c.bf16 %v243, %v242
      %v337 = vpack.c.bf16 %v333, %v244
      %v338 = vld [vmem:[%s219 + $0x41] sm:$0xff]
      %v339 = vpack.c.bf16 %v251, %v250
      %v340 = vpack.c.bf16 %v253, %v252
      %v341 = vpack.c.bf16 %v255, %v254
      %v342 = vpack.c.bf16 %v338, %v256
      %v343 = vld [vmem:[%s219 + $0x42] sm:$0xff]
      %v344 = vpack.c.bf16 %v263, %v262
      %v345 = vpack.c.bf16 %v265, %v264
      %v346 = vpack.c.bf16 %v267, %v266
      %v347 = vpack.c.bf16 %v343, %v268
      %v348 = vld [vmem:[%s219 + $0x43] sm:$0xff]
      %v349 = vpack.c.bf16 %v275, %v274
      %v350 = vpack.c.bf16 %v277, %v276
      %v351 = vpack.c.bf16 %v279, %v278
      %v352 = vpack.c.bf16 %v348, %v280
      %v353 = vld [vmem:[%s219 + $0x44] sm:$0xff]
      %v354 = vpack.c.bf16 %v287, %v286
      %v355 = vpack.c.bf16 %v289, %v288
      %v356 = vpack.c.bf16 %v291, %v290
      %v357 = vpack.c.bf16 %v353, %v292
      %v358 = vld [vmem:[%s219 + $0x45] sm:$0xff]
      %v359 = vpack.c.bf16 %v299, %v298
      %v360 = vpack.c.bf16 %v301, %v300
      %v361 = vpack.c.bf16 %v303, %v302
      %v362 = vpack.c.bf16 %v358, %v304
      %v363 = vld [vmem:[%s219 + $0x46] sm:$0xff]
      %v364 = vpack.c.bf16 %v311, %v310
      %v365 = vpack.c.bf16 %v313, %v312
      %v366 = vpack.c.bf16 %v315, %v314
      %v367 = vpack.c.bf16 %v363, %v316
      %372 = vrot.lane.b32.xlu0 %v257, 1
      %v373 = vpop.permute.xlu0 %372
      %374 = vrot.lane.b32.xlu0 %v258, 1
      %v375 = vpop.permute.xlu0 %374
      %376 = vrot.lane.b32.xlu0 %v259, 1
      %v377 = vpop.permute.xlu0 %376
      %378 = vrot.lane.b32.xlu0 %v260, 1
      %v379 = vpop.permute.xlu0 %378
      %384 = vrot.lane.b32.xlu0 %v269, 2
      %v385 = vpop.permute.xlu0 %384
      %386 = vrot.lane.b32.xlu0 %v270, 2
      %v387 = vpop.permute.xlu0 %386
      %388 = vrot.lane.b32.xlu0 %v271, 2
      %v389 = vpop.permute.xlu0 %388
      %390 = vrot.lane.b32.xlu0 %v272, 2
      %v391 = vpop.permute.xlu0 %390
      %396 = vrot.lane.b32.xlu0 %v281, 3
      %v397 = vpop.permute.xlu0 %396
      %398 = vrot.lane.b32.xlu0 %v282, 3
      %v399 = vpop.permute.xlu0 %398
      %400 = vrot.lane.b32.xlu0 %v283, 3
      %v401 = vpop.permute.xlu0 %400
      %402 = vrot.lane.b32.xlu0 %v284, 3
      %v403 = vpop.permute.xlu0 %402
      %408 = vrot.lane.b32.xlu0 %v293, 4
      %v409 = vpop.permute.xlu0 %408
      %410 = vrot.lane.b32.xlu0 %v294, 4
      %v411 = vpop.permute.xlu0 %410
      %412 = vrot.lane.b32.xlu0 %v295, 4
      %v413 = vpop.permute.xlu0 %412
      %414 = vrot.lane.b32.xlu0 %v296, 4
      %v415 = vpop.permute.xlu0 %414
      %420 = vrot.lane.b32.xlu0 %v305, 5
      %v421 = vpop.permute.xlu0 %420
      %422 = vrot.lane.b32.xlu0 %v306, 5
      %v423 = vpop.permute.xlu0 %422
      %424 = vrot.lane.b32.xlu0 %v307, 5
      %v425 = vpop.permute.xlu0 %424
      %426 = vrot.lane.b32.xlu0 %v308, 5
      %v427 = vpop.permute.xlu0 %426
      %432 = vrot.lane.b32.xlu0 %v317, 6
      %v433 = vpop.permute.xlu0 %432
      %434 = vrot.lane.b32.xlu0 %v318, 6
      %v435 = vpop.permute.xlu0 %434
      %436 = vrot.lane.b32.xlu0 %v319, 6
      %v437 = vpop.permute.xlu0 %436
      %438 = vrot.lane.b32.xlu0 %v320, 6
      %v439 = vpop.permute.xlu0 %438
      %444 = vrot.lane.b32.xlu0 %v329, 7
      %v445 = vpop.permute.xlu0 %444
      %446 = vrot.lane.b32.xlu0 %v330, 7
      %v447 = vpop.permute.xlu0 %446
      %448 = vrot.lane.b32.xlu0 %v331, 7
      %v449 = vpop.permute.xlu0 %448
      %450 = vrot.lane.b32.xlu0 %v332, 7
      %v451 = vpop.permute.xlu0 %450
      %456 = vrot.lane.b32.xlu0 %v334, 8
      %v457 = vpop.permute.xlu0 %456
      %458 = vrot.lane.b32.xlu0 %v335, 8
      %v459 = vpop.permute.xlu0 %458
      %460 = vrot.lane.b32.xlu0 %v336, 8
      %v461 = vpop.permute.xlu0 %460
      %462 = vrot.lane.b32.xlu0 %v337, 8
      %v463 = vpop.permute.xlu0 %462
      %468 = vrot.lane.b32.xlu0 %v339, 9
      %v469 = vpop.permute.xlu0 %468
      %470 = vrot.lane.b32.xlu0 %v340, 9
      %v471 = vpop.permute.xlu0 %470
      %472 = vrot.lane.b32.xlu0 %v341, 9
      %v473 = vpop.permute.xlu0 %472
      %474 = vrot.lane.b32.xlu0 %v342, 9
      %v475 = vpop.permute.xlu0 %474
      %480 = vrot.lane.b32.xlu0 %v344, 10
      %v481 = vpop.permute.xlu0 %480
      %482 = vrot.lane.b32.xlu0 %v345, 10
      %v483 = vpop.permute.xlu0 %482
      %484 = vrot.lane.b32.xlu0 %v346, 10
      %v485 = vpop.permute.xlu0 %484
      %486 = vrot.lane.b32.xlu0 %v347, 10
      %v487 = vpop.permute.xlu0 %486
      %492 = vrot.lane.b32.xlu0 %v349, 11
      %v493 = vpop.permute.xlu0 %492
      %494 = vrot.lane.b32.xlu0 %v350, 11
      %v495 = vpop.permute.xlu0 %494
      %496 = vrot.lane.b32.xlu0 %v351, 11
      %v497 = vpop.permute.xlu0 %496
      %498 = vrot.lane.b32.xlu0 %v352, 11
      %v499 = vpop.permute.xlu0 %498
      %504 = vrot.lane.b32.xlu0 %v354, 12
      %v505 = vpop.permute.xlu0 %504
      %506 = vrot.lane.b32.xlu0 %v355, 12
      %v507 = vpop.permute.xlu0 %506
      %508 = vrot.lane.b32.xlu0 %v356, 12
      %v509 = vpop.permute.xlu0 %508
      %510 = vrot.lane.b32.xlu0 %v357, 12
      %v511 = vpop.permute.xlu0 %510
      %516 = vrot.lane.b32.xlu0 %v359, 13
      %v517 = vpop.permute.xlu0 %516
      %518 = vrot.lane.b32.xlu0 %v360, 13
      %v519 = vpop.permute.xlu0 %518
      %520 = vrot.lane.b32.xlu0 %v361, 13
      %v521 = vpop.permute.xlu0 %520
      %522 = vrot.lane.b32.xlu0 %v362, 13
      %v523 = vpop.permute.xlu0 %522
      %528 = vrot.lane.b32.xlu0 %v364, 14
      %v529 = vpop.permute.xlu0 %528
      %530 = vrot.lane.b32.xlu0 %v365, 14
      %v531 = vpop.permute.xlu0 %530
      %532 = vrot.lane.b32.xlu0 %v366, 14
      %v533 = vpop.permute.xlu0 %532
      %534 = vrot.lane.b32.xlu0 %v367, 14
      %v535 = vpop.permute.xlu0 %534
      %vm536 = vcmask 7168
      %v539 = vsel %vm536, %v245, %v373
      %v542 = vsel %vm536, %v246, %v375
      %v545 = vsel %vm536, %v247, %v377
      %v548 = vsel %vm536, %v248, %v379
      %vm549 = vcmask 15360
      %v551 = vsel %vm549, %v539, %v385
      %v553 = vsel %vm549, %v542, %v387
      %v555 = vsel %vm549, %v545, %v389
      %v557 = vsel %vm549, %v548, %v391
      %vm558 = vcmask 23552
      %v560 = vsel %vm558, %v551, %v397
      %v562 = vsel %vm558, %v553, %v399
      %v564 = vsel %vm558, %v555, %v401
      %v566 = vsel %vm558, %v557, %v403
      %vm567 = vcmask 31744
      %v569 = vsel %vm567, %v560, %v409
      %v571 = vsel %vm567, %v562, %v411
      %v573 = vsel %vm567, %v564, %v413
      %v575 = vsel %vm567, %v566, %v415
      %vm576 = vcmask 39936
      %v578 = vsel %vm576, %v569, %v421
      %v580 = vsel %vm576, %v571, %v423
      %v582 = vsel %vm576, %v573, %v425
      %v584 = vsel %vm576, %v575, %v427
      %vm585 = vcmask 48128
      %v587 = vsel %vm585, %v578, %v433
      %v589 = vsel %vm585, %v580, %v435
      %v591 = vsel %vm585, %v582, %v437
      %v593 = vsel %vm585, %v584, %v439
      %vm594 = vcmask 56320
      %v596 = vsel %vm594, %v587, %v445
      %v598 = vsel %vm594, %v589, %v447
      %v600 = vsel %vm594, %v591, %v449
      %v602 = vsel %vm594, %v593, %v451
      %vm603 = vcmask 64512
      %v605 = vsel %vm603, %v596, %v457
      %v607 = vsel %vm603, %v598, %v459
      %v609 = vsel %vm603, %v600, %v461
      %v611 = vsel %vm603, %v602, %v463
      %vm612 = vcmask 72704
      %v614 = vsel %vm612, %v605, %v469
      %v616 = vsel %vm612, %v607, %v471
      %v618 = vsel %vm612, %v609, %v473
      %v620 = vsel %vm612, %v611, %v475
      %vm621 = vcmask 80896
      %v623 = vsel %vm621, %v614, %v481
      %v625 = vsel %vm621, %v616, %v483
      %v627 = vsel %vm621, %v618, %v485
      %v629 = vsel %vm621, %v620, %v487
      %vm630 = vcmask 89088
      %v632 = vsel %vm630, %v623, %v493
      %v634 = vsel %vm630, %v625, %v495
      %v636 = vsel %vm630, %v627, %v497
      %v638 = vsel %vm630, %v629, %v499
      %vm639 = vcmask 97280
      %v641 = vsel %vm639, %v632, %v505
      %v643 = vsel %vm639, %v634, %v507
      %v645 = vsel %vm639, %v636, %v509
      %v647 = vsel %vm639, %v638, %v511
      %vm648 = vcmask 105472
      %v650 = vsel %vm648, %v641, %v517
      %v652 = vsel %vm648, %v643, %v519
      %v654 = vsel %vm648, %v645, %v521
      %v656 = vsel %vm648, %v647, %v523
      %vm657 = vcmask 113664
      %v659 = vsel %vm657, %v650, %v529
      %v661 = vsel %vm657, %v652, %v531
      %v663 = vsel %vm657, %v654, %v533
      %v665 = vsel %vm657, %v656, %v535
      %v666 = vld [vmem:[%s224] sm:$0xf]
      %v667 = vld [vmem:[%s224 + $0x4] sm:$0xf]
      %v668 = vld [vmem:[%s227] sm:$0x1]
      %v670 = vlaneseq
      %v671 = vshrl.u32 %v670, 7
      %v672 = vsub.s32 0, %v671
      %v673 = vrot.slane %v668, %v672
      %v677 = vunpack.c.l.b16 %v666
      %v678 = vunpack.c.l.b16 %v667
      %v679 = vpack.c.b16 %v678, %v677
      %vm680 = vcmask 121856
      %v681 = vsel %vm680, %v659, 0
      %v683 = vsel %vm680, %v661, 0
      %v685 = vsel %vm680, %v663, 0
      %v687 = vsel %vm680, %v665, 0
      %vm689 = vcmask 1046528
      %vm690 = vcmask 1047552
      %v691 = vsel %vm689, 4294967295, 65535
      %v692 = vsel %vm690, %v691, 0
      %v694 = vand.u32 %v679, %v692
      %696 = vmatprep.subr.bf16.mxu0 0
      %697 = vmatpush1.bf16.msra.mxu0 0
      %698 = vmatprep.subr.bf16.mxu0 0
      %699 = vmatpush1.bf16.msra.mxu0 0
      %700 = vmatprep.subr.bf16.mxu0 0
      %701 = vmatpush1.bf16.msra.mxu0 0
      %702 = vmatprep.subr.bf16.mxu0 0
      %703 = vmatpush1.bf16.msra.mxu0 0
      %704 = vmatprep.subr.bf16.mxu0 0
      %705 = vmatpush1.bf16.msra.mxu0 0
      %706 = vmatprep.subr.bf16.mxu0 0
      %707 = vmatpush1.bf16.msra.mxu0 0
      %708 = vmatprep.subr.bf16.mxu0 0
      %709 = vmatpush1.bf16.msra.mxu0 0
      %710 = vmatprep.subr.bf16.mxu0 0
      %711 = vmatpush1.bf16.msra.mxu0 %v694
      %712 = vmatprep.subr.bf16.mxu0 0
      %713 = vmatpush2.bf16.msra.mxu0 0
      %714 = vmatprep.subr.bf16.mxu0 0
      %715 = vmatpush2.bf16.msra.mxu0 0
      %716 = vmatprep.subr.bf16.mxu0 0
      %717 = vmatpush2.bf16.msra.mxu0 0
      %718 = vmatprep.subr.bf16.mxu0 0
      %719 = vmatpush2.bf16.msra.mxu0 0
      %720 = vmatprep.subr.bf16.mxu0 0
      %721 = vmatpush2.bf16.msra.mxu0 0
      %722 = vmatprep.subr.bf16.mxu0 0
      %723 = vmatpush2.bf16.msra.mxu0 0
      %724 = vmatprep.subr.bf16.mxu0 0
      %725 = vmatpush2.bf16.msra.mxu0 0
      %726 = vmatprep.subr.bf16.mxu0 0
      %727 = vmatpush2.bf16.msra.mxu0 0
      %728 = vmatprep.mubr.bf16.mxu0 0
      %729 = vmatmul.mubr.bf16.gmra.mxu0 %v681
      %v730 = vpop.f32.mrf.mxu0
      %v731 = vadd.f32 %v673, %v730
      %v732 = vpop.f32.mrf.mxu0
      %v733 = vpop.f32.mrf.mxu0
      %v734 = vadd.f32 %v673, %v733
      %v735 = vpop.f32.mrf.mxu0
      %736 = vmatprep.mubr.bf16.mxu0 0
      %737 = vmatmul.mubr.bf16.gmra.mxu0 %v683
      %v738 = vpop.f32.mrf.mxu0
      %v739 = vadd.f32 %v673, %v738
      %v740 = vpop.f32.mrf.mxu0
      %v741 = vpop.f32.mrf.mxu0
      %v742 = vadd.f32 %v673, %v741
      %v743 = vpop.f32.mrf.mxu0
      %744 = vmatprep.mubr.bf16.mxu0 0
      %745 = vmatmul.mubr.bf16.gmra.mxu0 %v685
      %v746 = vpop.f32.mrf.mxu0
      %v747 = vadd.f32 %v673, %v746
      %v748 = vpop.f32.mrf.mxu0
      %v749 = vpop.f32.mrf.mxu0
      %v750 = vadd.f32 %v673, %v749
      %v751 = vpop.f32.mrf.mxu0
      %752 = vmatprep.mubr.bf16.mxu0 0
      %753 = vmatmul.mubr.bf16.gmra.mxu0 %v687
      %v754 = vpop.f32.mrf.mxu0
      %v755 = vadd.f32 %v673, %v754
      %v756 = vpop.f32.mrf.mxu0
      %v757 = vpop.f32.mrf.mxu0
      %v758 = vadd.f32 %v673, %v757
      %v759 = vpop.f32.mrf.mxu0
      %760 = vdwg.mxu0
      %vm761 = vcmp.ge.f32.partialorder %v731, 0.0
      %vm762 = vcmp.ge.f32.partialorder %v734, 0.0
      %vm763 = vcmp.ge.f32.partialorder %v739, 0.0
      %vm764 = vcmp.ge.f32.partialorder %v742, 0.0
      %vm765 = vcmp.ge.f32.partialorder %v747, 0.0
      %vm766 = vcmp.ge.f32.partialorder %v750, 0.0
      %vm767 = vcmp.ge.f32.partialorder %v755, 0.0
      %vm768 = vcmp.ge.f32.partialorder %v758, 0.0
      %v769 = vmul.f32 %v731, 0.1
      %v770 = vmul.f32 %v734, 0.1
      %v771 = vmul.f32 %v739, 0.1
      %v772 = vmul.f32 %v742, 0.1
      %v773 = vmul.f32 %v747, 0.1
      %v774 = vmul.f32 %v750, 0.1
      %v775 = vmul.f32 %v755, 0.1
      %v776 = vmul.f32 %v758, 0.1
      %v777 = vsel %vm761, %v731, %v769
      %v778 = vsel %vm762, %v734, %v770
      %v779 = vsel %vm763, %v739, %v771
      %v780 = vsel %vm764, %v742, %v772
      %v781 = vsel %vm765, %v747, %v773
      %v782 = vsel %vm766, %v750, %v774
      %v783 = vsel %vm767, %v755, %v775
      %v784 = vsel %vm768, %v758, %v776
      %vm785 = vcmask 130048
      %786 = vst.msk [vmem:[%s235] sm:$0xff] %vm785, %v777
      %787 = vst.msk [vmem:[%s235 + $0x8] sm:$0xff] %vm785, %v778
      %788 = vst.msk [vmem:[%s235 + $0x10] sm:$0xff] %vm785, %v779
      %789 = vst.msk [vmem:[%s235 + $0x18] sm:$0xff] %vm785, %v780
      %790 = vst.msk [vmem:[%s235 + $0x20] sm:$0xff] %vm785, %v781
      %791 = vst.msk [vmem:[%s235 + $0x28] sm:$0xff] %vm785, %v782
      %792 = vst.msk [vmem:[%s235 + $0x30] sm:$0xff] %vm785, %v783
      %793 = vst.msk [vmem:[%s235 + $0x38] sm:$0xff] %vm785, %v784
      %p794 = scmp.lt.s32.totalorder %s19, 3
      %s795 = scalar_select %p794, %s19, 3
      %p796 = scmp.lt.s32.totalorder %s18, 0
      %s797 = scalar_select %p796, %s18, 0
      %s798 = smul.addr %s795, 8
      %s799 = sadd.s32 %s797, %s798
      %s800 = smul.addr %s799, 8
      %s801 = scalar_lea.vmem %s3, %s800
      // Predicated region
      $region33: #{tpu_custom_call.1} parent=31 // pred_check
        %p802 = pneg %p126
      $region34: #{tpu_custom_call.1} parent=31 // pred_check_branch
        %804 = sbr.rel (%p802) target = $region36
      $region35: #{tpu_custom_call.1} parent=31 // pred_region
        _
      $region36: #{tpu_custom_call.1} parent=31 // pred_fallthru
        _
    $region32: #{tpu_custom_call.1} parent=5 // pred_fallthru
      _
    %p805 = scmp.le.s32.totalorder 2, %s9
    // Predicated region
    $region37: #{tpu_custom_call.1} parent=5 // pred_check
      %p806 = pneg %p805
    $region38: #{tpu_custom_call.1} parent=5 // pred_check_branch
      %808 = sbr.rel (%p806) target = $region40
    $region39: #{tpu_custom_call.1} parent=5 // pred_region
      %s809 = ssub.s32 %s9, 2
      // Predicated region
      $region41: #{tpu_custom_call.1} parent=39 // pred_check
        %p810 = pneg %p132
      $region42: #{tpu_custom_call.1} parent=39 // pred_check_branch
        %812 = sbr.rel (%p810) target = $region44
      $region43: #{tpu_custom_call.1} parent=39 // pred_region
        %p813 = scmp.lt.s32.totalorder %s21, 3
        %s814 = scalar_select %p813, %s21, 3
        %p815 = scmp.lt.s32.totalorder %s20, 0
        %s816 = scalar_select %p815, %s20, 0
        %s817 = smul.addr %s814, 8
        %s818 = sadd.s32 %s816, %s817
        %s819 = smul.addr %s818, 8
        %s820 = scalar_lea.vmem %s3, %s819
      $region44: #{tpu_custom_call.1} parent=39 // pred_fallthru
        _
    $region40: #{tpu_custom_call.1} parent=5 // pred_fallthru
      _
  $region6: #{tpu_custom_call.1} parent=0 // loop_footer
    %s13 = sadd.s32 1, %s9
  $region7: #{tpu_custom_call.1} parent=0 // loop_footer_branch
    %8 = sbr.rel target = $region3
  $region8: #{tpu_custom_call.1} parent=0 // loop_exit
    _

</llo_original>
